<compile_context>
chip_gen: v7x
topology: tpu7x:2x2x1
jax: 0.10.0
libtpu: 0.0.40
codegen_flags: <defaults>
</compile_context>

<pallas_src>
import jax
import jax.numpy as jnp
from jax.experimental import pallas as pl
from jax.experimental.pallas import tpu as pltpu


def _angle_resnet_kernel(a_ref, w1_ref, w2_ref, b_ref, out_ref):
    """Push one row tile through L fused AngleResNetLayers (L static)."""
    n_layers = w1_ref.shape[0]
    a = a_ref[...].astype(jnp.float32)            # residual carried in f32
    for layer in range(n_layers):                 # static unroll
        w1 = w1_ref[layer]                        # (c, c), pre-transposed
        w2 = w2_ref[layer]
        b = b_ref[layer].astype(jnp.float32)      # (2, c): rows = [b1; b2]
        h = jnp.maximum(a, 0.0)
        h = jnp.dot(h.astype(w1.dtype), w1,
                    preferred_element_type=jnp.float32) + b[0:1, :]
        h = jnp.maximum(h, 0.0)
        a = a + jnp.dot(h.astype(w2.dtype), w2,
                        preferred_element_type=jnp.float32) + b[1:2, :]
    out_ref[...] = a.astype(out_ref.dtype)


def prepare_angle_resnet_params(layer_params, *, weight_dtype=jnp.bfloat16):
    """Run ONCE at parameter-load time (not per forward call).

    layer_params: sequence of dicts with torch-convention tensors
      w1, b1, w2, b2   (w = [out_features, in_features]); one per layer.
    Returns:
      w1s, w2s: [L, c, c] weight_dtype, pre-transposed for `x @ W`
      biases:   [L, 2, c] float32, rows = (b1, b2)
    """
    w1s = jnp.stack([jnp.asarray(p["w1"], jnp.float32).T for p in layer_params])
    w2s = jnp.stack([jnp.asarray(p["w2"], jnp.float32).T for p in layer_params])
    biases = jnp.stack([
        jnp.stack([jnp.asarray(p["b1"], jnp.float32),
                   jnp.asarray(p["b2"], jnp.float32)])
        for p in layer_params])
    return w1s.astype(weight_dtype), w2s.astype(weight_dtype), biases


def _angle_resnet_xla(a, w1s, w2s, biases):
    """Plain-XLA fallback for tiny problems (e.g. n_rows * c < ~64K) where
    Pallas launch / per-step overhead dominates."""
    out_dtype = a.dtype
    x = a.astype(jnp.float32)
    for layer in range(w1s.shape[0]):
        h = jax.nn.relu(x)
        h = jax.nn.relu(jnp.dot(h.astype(w1s.dtype), w1s[layer],
                                preferred_element_type=jnp.float32)
                        + biases[layer, 0])
        x = x + (jnp.dot(h.astype(w2s.dtype), w2s[layer],
                         preferred_element_type=jnp.float32)
                 + biases[layer, 1])
    return x.astype(out_dtype)


def angle_resnet_layers(a, w1s, w2s, biases, *, block_rows=None, use_pallas=True):
    """Apply L fused AngleResNetLayers: a <- a + Lin2(relu(Lin1(relu(a)))).

    a: [..., c] float32 or bfloat16 activations.
    w1s / w2s / biases: from prepare_angle_resnet_params (torch semantics).
    """
    if not use_pallas:
        return _angle_resnet_xla(a.reshape(-1, a.shape[-1]), w1s, w2s,
                                 biases).reshape(a.shape)

    orig_shape = a.shape
    c = a.shape[-1]
    n_layers = w1s.shape[0]
    a2d = a.reshape(-1, c)                        # free, metadata-only reshape
    n_rows = a2d.shape[0]

    # Row tile: multiple of 8 sublanes, <= 2048 rows, aiming for ~8 grid steps
    # (>= 4 per TensorCore on dual-TC v7x) so pipelining hides the DMA.
    if block_rows is None:
        block_rows = pl.cdiv(n_rows, 8)
        block_rows = min(2048, ((block_rows + 7) // 8) * 8)
    block_rows = max(8, ((block_rows + 7) // 8) * 8)
    grid = (pl.cdiv(n_rows, block_rows),)         # ragged last block is masked

    # Scoped-VMEM budget with headroom; cap at 48 MiB (safe on v7x's 64 MiB).
    act_bytes = block_rows * c * jnp.dtype(a.dtype).itemsize
    f32_bytes = block_rows * c * 4
    w_bytes = 2 * n_layers * c * c * jnp.dtype(w1s.dtype).itemsize
    b_bytes = n_layers * 2 * c * 4
    vmem_need = (2 * 2 * act_bytes               # in + out, double-buffered
                 + 4 * f32_bytes                 # f32 intermediates
                 + 2 * (w_bytes + b_bytes))      # grid-invariant operands
    vmem_limit = int(min(max(2 * vmem_need, 16 * 1024 * 1024),
                         48 * 1024 * 1024))

    row_spec = pl.BlockSpec((block_rows, c), lambda i: (i, 0))
    w_spec = pl.BlockSpec((n_layers, c, c), lambda i: (0, 0, 0))
    b_spec = pl.BlockSpec((n_layers, 2, c), lambda i: (0, 0, 0))

    out = pl.pallas_call(
        _angle_resnet_kernel,
        out_shape=jax.ShapeDtypeStruct((n_rows, c), a.dtype),
        grid=grid,
        in_specs=[row_spec, w_spec, w_spec, b_spec],
        out_specs=row_spec,
        compiler_params=pltpu.CompilerParams(
            dimension_semantics=("parallel",),
            vmem_limit_bytes=vmem_limit,
        ),
    )(a2d, w1s, w2s, biases)

    return out.reshape(orig_shape)


def _reference(a, layer_params):
    """Pure-JAX f32 reference mirroring the torch forward, applied per layer."""
    x = jnp.asarray(a, jnp.float32)
    for p in layer_params:
        h = jax.nn.relu(x)
        h = jax.nn.relu(h @ jnp.asarray(p["w1"], jnp.float32).T + p["b1"])
        x = x + (h @ jnp.asarray(p["w2"], jnp.float32).T + p["b2"])
    return x


def _init_params(key, c):
    ks = jax.random.split(key, 4)
    scale = 1.0 / jnp.sqrt(c)
    return {
        "w1": jax.random.uniform(ks[0], (c, c), jnp.float32, -scale, scale),
        "b1": jax.random.uniform(ks[1], (c,), jnp.float32, -scale, scale),
        "w2": jax.random.uniform(ks[2], (c, c), jnp.float32, -scale, scale),
        "b2": jax.random.uniform(ks[3], (c,), jnp.float32, -scale, scale),
    }


if __name__ == "__main__":
    key = jax.random.PRNGKey(0)
    c = 32                       # small example hidden size (AlphaFold uses 128)
    batch, seq = 2, 8            # a: [batch, seq, c]

    k_a, k_p1, k_p2 = jax.random.split(key, 3)
    a = jax.random.normal(k_a, (batch, seq, c), jnp.float32)
    p1 = _init_params(k_p1, c)
    p2 = _init_params(k_p2, c)

    fwd = jax.jit(angle_resnet_layers)

    # --- single AngleResNetLayer (matches the torch module exactly) ---
    w1s, w2s, bs = prepare_angle_resnet_params([p1])        # bf16 weights
    out1 = jax.block_until_ready(fwd(a, w1s, w2s, bs))
    ref1 = _reference(a, [p1])
    assert out1.shape == a.shape
    err1 = float(jnp.max(jnp.abs(out1 - ref1)))
    # bf16 matmuls with f32 accumulation -> looser tolerance vs f32 reference
    # (pass weight_dtype=jnp.float32 to prepare_angle_resnet_params for parity).
    assert err1 < 5e-2, f"1-layer mismatch vs reference: max |err| = {err1}"

    # --- two stacked layers fused into one pallas_call (one HBM round trip) ---
    w1s2, w2s2, bs2 = prepare_angle_resnet_params([p1, p2])
    out2 = jax.block_until_ready(fwd(a, w1s2, w2s2, bs2))
    ref2 = _reference(a, [p1, p2])
    err2 = float(jnp.max(jnp.abs(out2 - ref2)))
    assert err2 < 5e-2, f"2-layer mismatch vs reference: max |err| = {err2}"

    print("KERNEL_OK")
</pallas_src>

<mosaic_0001>
module attributes {stable_mosaic.version = 11 : i64} {
  func.func @_angle_resnet_kernel(%arg0: i32, %arg1: memref<8x32xf32, #tpu.memory_space<vmem>>, %arg2: memref<1x32x32xbf16, #tpu.memory_space<vmem>>, %arg3: memref<1x32x32xbf16, #tpu.memory_space<vmem>>, %arg4: memref<1x2x32xf32, #tpu.memory_space<vmem>>, %arg5: memref<8x32xf32, #tpu.memory_space<vmem>>) attributes {dimension_semantics = [#tpu.dimension_semantics<parallel>], iteration_bounds = array<i64: 2>, scalar_prefetch = 0 : i64, scratch_operands = 0 : i64, tpu.core_type = #tpu.core_type<tc>, window_params = [{transform_indices = @transform_0, window_bounds = array<i64: 8, 32>}, {pipeline_mode = #tpu.pipeline_mode<synchronous>, transform_indices = @transform_1, window_bounds = array<i64: 1, 32, 32>}, {pipeline_mode = #tpu.pipeline_mode<synchronous>, transform_indices = @transform_2, window_bounds = array<i64: 1, 32, 32>}, {pipeline_mode = #tpu.pipeline_mode<synchronous>, transform_indices = @transform_3, window_bounds = array<i64: 1, 2, 32>}, {transform_indices = @transform_4, window_bounds = array<i64: 8, 32>}]} {
    %c0 = arith.constant 0 : index
    %c0_0 = arith.constant 0 : index
    %0 = vector.load %arg1[%c0, %c0_0] : memref<8x32xf32, #tpu.memory_space<vmem>>, vector<8x32xf32>
    %c0_1 = arith.constant 0 : index
    %c0_2 = arith.constant 0 : index
    %c0_3 = arith.constant 0 : index
    %1 = vector.load %arg2[%c0_1, %c0_2, %c0_3] : memref<1x32x32xbf16, #tpu.memory_space<vmem>>, vector<1x32x32xbf16>
    %2 = vector.shape_cast %1 : vector<1x32x32xbf16> to vector<32x32xbf16>
    %c0_4 = arith.constant 0 : index
    %c0_5 = arith.constant 0 : index
    %c0_6 = arith.constant 0 : index
    %3 = vector.load %arg3[%c0_4, %c0_5, %c0_6] : memref<1x32x32xbf16, #tpu.memory_space<vmem>>, vector<1x32x32xbf16>
    %4 = vector.shape_cast %3 : vector<1x32x32xbf16> to vector<32x32xbf16>
    %c0_7 = arith.constant 0 : index
    %c0_8 = arith.constant 0 : index
    %c0_9 = arith.constant 0 : index
    %5 = vector.load %arg4[%c0_7, %c0_8, %c0_9] : memref<1x2x32xf32, #tpu.memory_space<vmem>>, vector<1x2x32xf32>
    %6 = vector.shape_cast %5 : vector<1x2x32xf32> to vector<2x32xf32>
    %cst = arith.constant 0.000000e+00 : f32
    %7 = vector.broadcast %cst : f32 to vector<8x32xf32>
    %8 = arith.maximumf %0, %7 : vector<8x32xf32>
    %9 = arith.truncf %8 : vector<8x32xf32> to vector<8x32xbf16>
    %cst_10 = arith.constant dense<0.000000e+00> : vector<8x32xf32>
    %10 = tpu.matmul %9, %2, %cst_10 {dimension_numbers = #tpu.dot_dimension_numbers<[1], [0], [0], [1], [0, 0, 1, 1], [], []>} : vector<8x32xbf16>, vector<32x32xbf16>, vector<8x32xf32> -> vector<8x32xf32>
    %11 = vector.extract_strided_slice %6 {offsets = [0, 0], sizes = [1, 32], strides = [1, 1]} : vector<2x32xf32> to vector<1x32xf32>
    %12 = vector.broadcast %11 : vector<1x32xf32> to vector<8x32xf32>
    %13 = arith.addf %10, %12 : vector<8x32xf32>
    %cst_11 = arith.constant 0.000000e+00 : f32
    %14 = vector.broadcast %cst_11 : f32 to vector<8x32xf32>
    %15 = arith.maximumf %13, %14 : vector<8x32xf32>
    %16 = arith.truncf %15 : vector<8x32xf32> to vector<8x32xbf16>
    %cst_12 = arith.constant dense<0.000000e+00> : vector<8x32xf32>
    %17 = tpu.matmul %16, %4, %cst_12 {dimension_numbers = #tpu.dot_dimension_numbers<[1], [0], [0], [1], [0, 0, 1, 1], [], []>} : vector<8x32xbf16>, vector<32x32xbf16>, vector<8x32xf32> -> vector<8x32xf32>
    %18 = arith.addf %0, %17 : vector<8x32xf32>
    %19 = vector.extract_strided_slice %6 {offsets = [1, 0], sizes = [1, 32], strides = [1, 1]} : vector<2x32xf32> to vector<1x32xf32>
    %20 = vector.broadcast %19 : vector<1x32xf32> to vector<8x32xf32>
    %21 = arith.addf %18, %20 : vector<8x32xf32>
    %c0_13 = arith.constant 0 : index
    %c0_14 = arith.constant 0 : index
    %22 = vector.load %arg5[%c0_13, %c0_14] : memref<8x32xf32, #tpu.memory_space<vmem>>, vector<8x32xf32>
    tpu.vector_store %arg5[%c0_13, %c0_14], %21 {strides = array<i32>} : memref<8x32xf32, #tpu.memory_space<vmem>>, vector<8x32xf32>,
    return
  }
  func.func @transform_0(%arg0: i32) -> (i32, i32) {
    %c0_i32 = arith.constant 0 : i32
    %c0_i32_0 = arith.constant 0 : i32
    return %arg0, %c0_i32 : i32, i32
  }
  func.func @transform_1(%arg0: i32) -> (i32, i32, i32) {
    %c0_i32 = arith.constant 0 : i32
    %c0_i32_0 = arith.constant 0 : i32
    %c0_i32_1 = arith.constant 0 : i32
    %c0_i32_2 = arith.constant 0 : i32
    return %c0_i32, %c0_i32_0, %c0_i32_1 : i32, i32, i32
  }
  func.func @transform_2(%arg0: i32) -> (i32, i32, i32) {
    %c0_i32 = arith.constant 0 : i32
    %c0_i32_0 = arith.constant 0 : i32
    %c0_i32_1 = arith.constant 0 : i32
    %c0_i32_2 = arith.constant 0 : i32
    return %c0_i32, %c0_i32_0, %c0_i32_1 : i32, i32, i32
  }
  func.func @transform_3(%arg0: i32) -> (i32, i32, i32) {
    %c0_i32 = arith.constant 0 : i32
    %c0_i32_0 = arith.constant 0 : i32
    %c0_i32_1 = arith.constant 0 : i32
    %c0_i32_2 = arith.constant 0 : i32
    return %c0_i32, %c0_i32_0, %c0_i32_1 : i32, i32, i32
  }
  func.func @transform_4(%arg0: i32) -> (i32, i32) {
    %c0_i32 = arith.constant 0 : i32
    %c0_i32_0 = arith.constant 0 : i32
    return %arg0, %c0_i32 : i32, i32
  }
}

</mosaic_0001>

<llo_original>
// kernel: angle_resnet_layers.1
$region0: #{angle_resnet_layers.1}
  #allocation0 [shape = 'u32[]', space=smem, size = 0x4, offset = 0x4, fixed_abs, tag = 'smem constant byte address 0x4 - core index']
  #allocation1 [shape = 'u32[144,128]{1,0:T(1,128)}', space=vmem, size = 0x12000, scoped, tag = 'internal scratch']
  %s0 = inlined_call_operand.hbm [shape: f32[16,32], index: 0, kind: input, shape index: {}]
  %s1 = inlined_call_operand.hbm [shape: bf16[1,32,32], index: 1, kind: input, shape index: {}]
  %s2 = inlined_call_operand.hbm [shape: bf16[1,32,32], index: 2, kind: input, shape index: {}]
  %s3 = inlined_call_operand.vmem [shape: f32[1,2,32], index: 3, kind: input, shape index: {}]
  %s4 = inlined_call_operand.hbm [shape: f32[16,32], index: 4, kind: output, shape index: {}]
  %s5 = sld [smem:[#allocation0]]
  $region61: #{angle_resnet_layers.1} parent=0
    _
  %s7 = ssub.s32 1, %s5
  %s8 = scalar_select 0, %s7, %s5
  $region1: #{angle_resnet_layers.1} parent=0
    #allocation2 [shape = 'u8[8192]{0}', space=vmem, size = 0x2000, scoped, tag = 'input window, operand 0']
    #allocation3 [shape = 's32[2]{0}', space=sflag, size = 0x8, scoped, tag = 'scoped memory for angle_resnet_layers.1']
    #allocation4 [shape = 's32[2]{0}', space=sflag, size = 0x8, scoped, tag = 'scoped memory for angle_resnet_layers.1']
    #allocation5 [shape = 'u8[8192]{0}', space=vmem, size = 0x2000, scoped, tag = 'input window, operand 1, single buffered']
    #allocation6 [shape = 's32[1]{0}', space=sflag, size = 0x4, scoped, tag = 'scoped memory for angle_resnet_layers.1']
    #allocation7 [shape = 'u8[8192]{0}', space=vmem, size = 0x2000, scoped, tag = 'input window, operand 2, single buffered']
    #allocation8 [shape = 'u8[8192]{0}', space=vmem, size = 0x2000, scoped, tag = 'output window, operand 0']
    %9 = vsyncpa [#allocation3], 0
    %s10 = scalar_lea.sflag [#allocation3], 1
    %11 = vsyncpa %s10, 0
    %12 = vsyncpa [#allocation6], 0
    %13 = vsyncpa [#allocation4], 0
    %s14 = scalar_lea.sflag [#allocation4], 1
    %15 = vsyncpa %s14, 0
    loop: start=0, step=1, limit=4
    $region2: #{angle_resnet_layers.1} parent=1 // loop_pre_header
      _
    $region3: #{angle_resnet_layers.1} parent=1 // loop_header
      %s17 = sphi 0, %s21
      %p18 = scmp.ge.s32.totalorder %s17, 4
      %s27 = sphi 0, %s29
      %s30 = sphi 0, %s27
      %s31 = sphi 0, %s30
      %s47 = sphi 0, %s31
      %s51 = sphi 0, %s51
      %s53 = sphi 0, %s51
      %s54 = sphi 0, %s53
      %s68 = sphi 0, %s54
      %s72 = sphi 0, %s72
      %s74 = sphi 0, %s72
      %s75 = sphi 0, %s74
      %s89 = sphi 0, %s75
      %s93 = sphi 0, %s93
      %s95 = sphi 0, %s93
      %s96 = sphi 0, %s95
      %s110 = sphi 0, %s96
      %s116 = sphi 0, %s118
      %s119 = sphi 0, %s116
      %s120 = sphi 0, %s119
      %s136 = sphi 0, %s120
    $region4: #{angle_resnet_layers.1} parent=1 // loop_header_branch
      %20 = sbr.rel (%p18) target = $region8
    $region5: #{angle_resnet_layers.1} parent=1 // loop_body
      %s22 = ssub.s32 %s17, 1
      %s23 = ssub.s32 %s17, 2
      %s24 = sadd.s32 %s17, 1
      %s25 = ssub.s32 %s17, %s24
      %p26 = scmp.eq.s32.totalorder %s25, 0
      %s28 = sadd.s32 %s27, 1
      %s29 = scalar_select %p26, %s27, %s28
      %p32 = pneg %p26
      %p33 = scmp.eq.s32.totalorder %s17, 1
      %p34 = por %p32, %p33
      %p35 = scmp.ne.s32.totalorder %s27, %s30
      %p36 = scmp.eq.s32.totalorder %s17, 0
      %p37 = por %p35, %p36
      %p38 = scmp.ne.s32.totalorder %s27, %s30
      %p39 = scmp.eq.s32.totalorder %s22, 1
      %p40 = por %p38, %p39
      %p41 = scmp.ne.s32.totalorder %s30, %s31
      %p42 = scmp.eq.s32.totalorder %s22, 0
      %p43 = por %p41, %p42
      %p44 = scmp.ne.s32.totalorder %s30, %s31
      %p45 = scmp.eq.s32.totalorder %s23, 1
      %p46 = por %p44, %p45
      %p48 = scmp.ne.s32.totalorder %s31, %s47
      %p49 = scmp.eq.s32.totalorder %s23, 0
      %p50 = por %p48, %p49
      %s52 = sadd.s32 %s51, 1
      %p55 = scmp.eq.s32.totalorder %s17, 1
      %p56 = scmp.ne.s32.totalorder %s51, %s53
      %p57 = scmp.eq.s32.totalorder %s17, 0
      %p58 = por %p56, %p57
      %p59 = scmp.ne.s32.totalorder %s51, %s53
      %p60 = scmp.eq.s32.totalorder %s22, 1
      %p61 = por %p59, %p60
      %p62 = scmp.ne.s32.totalorder %s53, %s54
      %p63 = scmp.eq.s32.totalorder %s22, 0
      %p64 = por %p62, %p63
      %p65 = scmp.ne.s32.totalorder %s53, %s54
      %p66 = scmp.eq.s32.totalorder %s23, 1
      %p67 = por %p65, %p66
      %p69 = scmp.ne.s32.totalorder %s54, %s68
      %p70 = scmp.eq.s32.totalorder %s23, 0
      %p71 = por %p69, %p70
      %s73 = sadd.s32 %s72, 1
      %p76 = scmp.eq.s32.totalorder %s17, 1
      %p77 = scmp.ne.s32.totalorder %s72, %s74
      %p78 = scmp.eq.s32.totalorder %s17, 0
      %p79 = por %p77, %p78
      %p80 = scmp.ne.s32.totalorder %s72, %s74
      %p81 = scmp.eq.s32.totalorder %s22, 1
      %p82 = por %p80, %p81
      %p83 = scmp.ne.s32.totalorder %s74, %s75
      %p84 = scmp.eq.s32.totalorder %s22, 0
      %p85 = por %p83, %p84
      %p86 = scmp.ne.s32.totalorder %s74, %s75
      %p87 = scmp.eq.s32.totalorder %s23, 1
      %p88 = por %p86, %p87
      %p90 = scmp.ne.s32.totalorder %s75, %s89
      %p91 = scmp.eq.s32.totalorder %s23, 0
      %p92 = por %p90, %p91
      %s94 = sadd.s32 %s93, 1
      %p97 = scmp.eq.s32.totalorder %s17, 1
      %p98 = scmp.ne.s32.totalorder %s93, %s95
      %p99 = scmp.eq.s32.totalorder %s17, 0
      %p100 = por %p98, %p99
      %p101 = scmp.ne.s32.totalorder %s93, %s95
      %p102 = scmp.eq.s32.totalorder %s22, 1
      %p103 = por %p101, %p102
      %p104 = scmp.ne.s32.totalorder %s95, %s96
      %p105 = scmp.eq.s32.totalorder %s22, 0
      %p106 = por %p104, %p105
      %p107 = scmp.ne.s32.totalorder %s95, %s96
      %p108 = scmp.eq.s32.totalorder %s23, 1
      %p109 = por %p107, %p108
      %p111 = scmp.ne.s32.totalorder %s96, %s110
      %p112 = scmp.eq.s32.totalorder %s23, 0
      %p113 = por %p111, %p112
      %s114 = ssub.s32 %s17, %s24
      %p115 = scmp.eq.s32.totalorder %s114, 0
      %s117 = sadd.s32 %s116, 1
      %s118 = scalar_select %p115, %s116, %s117
      %p121 = pneg %p115
      %p122 = scmp.eq.s32.totalorder %s17, 1
      %p123 = por %p121, %p122
      %p124 = scmp.ne.s32.totalorder %s116, %s119
      %p125 = scmp.eq.s32.totalorder %s17, 0
      %p126 = por %p124, %p125
      %p127 = scmp.ne.s32.totalorder %s116, %s119
      %p128 = scmp.eq.s32.totalorder %s22, 1
      %p129 = por %p127, %p128
      %p130 = scmp.ne.s32.totalorder %s119, %s120
      %p131 = scmp.eq.s32.totalorder %s22, 0
      %p132 = por %p130, %p131
      %p133 = scmp.ne.s32.totalorder %s119, %s120
      %p134 = scmp.eq.s32.totalorder %s23, 1
      %p135 = por %p133, %p134
      %p137 = scmp.ne.s32.totalorder %s120, %s136
      %p138 = scmp.eq.s32.totalorder %s23, 0
      %p139 = por %p137, %p138
      %p140 = scmp.le.s32.totalorder 1, %s17
      %p141 = scmp.lt.s32.totalorder %s17, 3
      %p142 = pnand %p140, %p141
      %p143 = pneg %p142
      // Predicated region
      $region9: #{angle_resnet_layers.1} parent=5 // pred_check
        _
      $region10: #{angle_resnet_layers.1} parent=5 // pred_check_branch
        %145 = sbr.rel (%p142) target = $region12
      $region11: #{angle_resnet_layers.1} parent=5 // pred_region
        %s146 = ssub.s32 %s17, 1
        // Predicated region
        $region13: #{angle_resnet_layers.1} parent=11 // pred_check
          %p147 = pneg %p64
        $region14: #{angle_resnet_layers.1} parent=11 // pred_check_branch
          %149 = sbr.rel (%p147) target = $region16
        $region15: #{angle_resnet_layers.1} parent=11 // pred_region
          %s151 = ssub.s32 256, 256
          %152 = vsyncadd [#allocation6], %s151
          %s153 = sshll.u32 [#allocation5], 4
          %s154 = int_to_ptr.vmem [resolvable:$true] %s153
          %159 = dma.hbm_to_vmem [thread:$0]  %s1, 256, %s154, [#allocation6], 64, 64, 4
        $region16: #{angle_resnet_layers.1} parent=11 // pred_fallthru
          _
        // Predicated region
        $region17: #{angle_resnet_layers.1} parent=11 // pred_check
          %p160 = pneg %p85
        $region18: #{angle_resnet_layers.1} parent=11 // pred_check_branch
          %162 = sbr.rel (%p160) target = $region20
        $region19: #{angle_resnet_layers.1} parent=11 // pred_region
          %s164 = ssub.s32 256, 256
          %165 = vsyncadd [#allocation6], %s164
          %s166 = sshll.u32 [#allocation7], 4
          %s167 = int_to_ptr.vmem [resolvable:$true] %s166
          %172 = dma.hbm_to_vmem [thread:$0]  %s2, 256, %s167, [#allocation6], 64, 64, 4
        $region20: #{angle_resnet_layers.1} parent=11 // pred_fallthru
          _
        // Predicated region
        $region21: #{angle_resnet_layers.1} parent=11 // pred_check
          %p173 = pneg %p106
        $region22: #{angle_resnet_layers.1} parent=11 // pred_check_branch
          %175 = sbr.rel (%p173) target = $region24
        $region23: #{angle_resnet_layers.1} parent=11 // pred_region
          _
        $region24: #{angle_resnet_layers.1} parent=11 // pred_fallthru
          _
      $region12: #{angle_resnet_layers.1} parent=5 // pred_fallthru
        _
      %p176 = scmp.lt.s32.totalorder %s17, 2
      // Predicated region
      $region25: #{angle_resnet_layers.1} parent=5 // pred_check
        %p177 = pneg %p176
      $region26: #{angle_resnet_layers.1} parent=5 // pred_check_branch
        %179 = sbr.rel (%p177) target = $region28
      $region27: #{angle_resnet_layers.1} parent=5 // pred_region
        // Predicated region
        $region29: #{angle_resnet_layers.1} parent=27 // pred_check
          %p180 = pneg %p37
        $region30: #{angle_resnet_layers.1} parent=27 // pred_check_branch
          %182 = sbr.rel (%p180) target = $region32
        $region31: #{angle_resnet_layers.1} parent=27 // pred_region
          %s183 = sand.u32 %s27, 1
          %s184 = scalar_lea.sflag [#allocation3], %s183
          %s185 = sand.u32 %s27, 1
          %s186 = smul.addr %s185, 8
          %s187 = scalar_lea.vmem [#allocation2], %s186
          %s189 = ssub.s32 128, 128
          %190 = vsyncadd %s184, %s189
          %s191 = smul.addr %s17, 128
          %s192 = scalar_lea.hbm %s0, %s191
          %s194 = sshll.u32 %s187, 4
          %s195 = int_to_ptr.vmem [resolvable:$true] %s194
          %197 = dma.hbm_to_vmem [thread:$0]  %s192, 128, %s195, %s184
        $region32: #{angle_resnet_layers.1} parent=27 // pred_fallthru
          _
      $region28: #{angle_resnet_layers.1} parent=5 // pred_fallthru
        _
      %p198 = scmp.le.s32.totalorder 1, %s17
      %p199 = scmp.lt.s32.totalorder %s17, 3
      %p200 = pnand %p198, %p199
      %p201 = pneg %p200
      // Predicated region
      $region33: #{angle_resnet_layers.1} parent=5 // pred_check
        _
      $region34: #{angle_resnet_layers.1} parent=5 // pred_check_branch
        %203 = sbr.rel (%p200) target = $region36
      $region35: #{angle_resnet_layers.1} parent=5 // pred_region
        %s204 = ssub.s32 %s17, 1
        %s205 = sand.u32 %s30, 1
        %s206 = scalar_lea.sflag [#allocation3], %s205
        %s207 = sand.u32 %s30, 1
        %s208 = smul.addr %s207, 8
        %s209 = scalar_lea.vmem [#allocation2], %s208
        // Predicated region
        $region37: #{angle_resnet_layers.1} parent=35 // pred_check
          %p210 = pneg %p43
        $region38: #{angle_resnet_layers.1} parent=35 // pred_check_branch
          %212 = sbr.rel (%p210) target = $region40
        $region39: #{angle_resnet_layers.1} parent=35 // pred_region
          %213 = dma.done %s206, 128
        $region40: #{angle_resnet_layers.1} parent=35 // pred_fallthru
          _
        // Predicated region
        $region41: #{angle_resnet_layers.1} parent=35 // pred_check
          %p214 = pneg %p64
        $region42: #{angle_resnet_layers.1} parent=35 // pred_check_branch
          %216 = sbr.rel (%p214) target = $region44
        $region43: #{angle_resnet_layers.1} parent=35 // pred_region
          %217 = dma.done [#allocation6], 256
        $region44: #{angle_resnet_layers.1} parent=35 // pred_fallthru
          _
        // Predicated region
        $region45: #{angle_resnet_layers.1} parent=35 // pred_check
          %p218 = pneg %p85
        $region46: #{angle_resnet_layers.1} parent=35 // pred_check_branch
          %220 = sbr.rel (%p218) target = $region48
        $region47: #{angle_resnet_layers.1} parent=35 // pred_region
          %221 = dma.done [#allocation6], 256
        $region48: #{angle_resnet_layers.1} parent=35 // pred_fallthru
          _
        %s222 = sand.u32 %s30, 1
        %s223 = scalar_lea.sflag [#allocation3], %s222
        %s224 = sand.u32 %s30, 1
        %s225 = smul.addr %s224, 8
        %s226 = scalar_lea.vmem [#allocation2], %s225
        %p227 = pneg %p43
        %p228 = pneg %p40
        %p229 = pneg %p64
        %p230 = pneg %p61
        %p231 = pneg %p85
        %p232 = pneg %p82
        %p233 = pneg %p106
        %p234 = pneg %p103
        %p235 = pneg %p132
        %p236 = pneg %p129
        %s237 = sand.u32 %s119, 1
        %s238 = scalar_lea.sflag [#allocation4], %s237
        %s239 = sand.u32 %s119, 1
        %s240 = smul.addr %s239, 8
        %s241 = scalar_lea.vmem [#allocation8], %s240
        %v243 = vld [vmem:[%s209] sm:$0xff]
        %v244 = vld [vmem:[#allocation5] sm:$0xf]
        %v245 = vld [vmem:[#allocation5 + $0x4] sm:$0xf]
        %v246 = vld [vmem:[#allocation5 + $0x8] sm:$0xf]
        %v247 = vld [vmem:[#allocation5 + $0xc] sm:$0xf]
        %v248 = vld [vmem:[#allocation7] sm:$0xf]
        %v249 = vld [vmem:[#allocation7 + $0x4] sm:$0xf]
        %v250 = vld [vmem:[#allocation7 + $0x8] sm:$0xf]
        %v251 = vld [vmem:[#allocation7 + $0xc] sm:$0xf]
        %v252 = vld [vmem:[%s3] sm:$0x3]
        %v253 = vmax.f32 %v243, 0.0
        %v254 = vpack.c.bf16 %v253, %v253
        %v255 = vlaneseq
        %v256 = vshrl.u32 %v255, 7
        %v257 = vsub.s32 0, %v256
        %v258 = vrot.slane %v252, %v257
        %v263 = vunpack.c.l.b16 %v244
        %v264 = vunpack.c.l.b16 %v245
        %v265 = vunpack.c.l.b16 %v246
        %v266 = vunpack.c.l.b16 %v247
        %v267 = vpack.c.b16 %v264, %v263
        %v268 = vpack.c.b16 %v266, %v265
        %vm271 = vcmask 261120
        %v273 = vsel %vm271, %v254, 0
        %275 = vmatprep.subr.bf16.mxu0 0
        %276 = vmatpush1.bf16.msra.mxu0 %v267
        %277 = vmatprep.subr.bf16.mxu0 0
        %278 = vmatpush1.bf16.msra.mxu0 %v268
        %279 = vmatprep.subr.bf16.mxu0 0
        %280 = vmatpush1.bf16.msra.mxu0 0
        %281 = vmatprep.subr.bf16.mxu0 0
        %282 = vmatpush1.bf16.msra.mxu0 0
        %283 = vmatprep.subr.bf16.mxu0 0
        %284 = vmatpush1.bf16.msra.mxu0 0
        %285 = vmatprep.subr.bf16.mxu0 0
        %286 = vmatpush1.bf16.msra.mxu0 0
        %287 = vmatprep.subr.bf16.mxu0 0
        %288 = vmatpush1.bf16.msra.mxu0 0
        %289 = vmatprep.subr.bf16.mxu0 0
        %290 = vmatpush1.bf16.msra.mxu0 0
        %291 = vmatprep.subr.bf16.mxu0 0
        %292 = vmatpush1.bf16.msra.mxu0 0
        %293 = vmatprep.subr.bf16.mxu0 0
        %294 = vmatpush1.bf16.msra.mxu0 0
        %295 = vmatprep.subr.bf16.mxu0 0
        %296 = vmatpush1.bf16.msra.mxu0 0
        %297 = vmatprep.subr.bf16.mxu0 0
        %298 = vmatpush1.bf16.msra.mxu0 0
        %299 = vmatprep.subr.bf16.mxu0 0
        %300 = vmatpush1.bf16.msra.mxu0 0
        %301 = vmatprep.subr.bf16.mxu0 0
        %302 = vmatpush1.bf16.msra.mxu0 0
        %303 = vmatprep.subr.bf16.mxu0 0
        %304 = vmatpush1.bf16.msra.mxu0 0
        %305 = vmatprep.subr.bf16.mxu0 0
        %306 = vmatpush1.bf16.msra.mxu0 0
        %307 = vmatprep.mubr.bf16.mxu0 0
        %308 = vmatmul.mubr.bf16.gmra.mrb[0].mxu0 %v273
        %v309 = vpop.f32.mrb[0].mxu0
        %v310 = vadd.f32 %v258, %v309
        %v311 = vpop.f32.mrb[0].mxu0
        %v312 = vpop.f32.mrb[0].mxu0
        %v313 = vpop.f32.mrb[0].mxu0
        %314 = vdwg.mxu0
        %v315 = vmax.f32 %v310, 0.0
        %v316 = vpack.c.bf16 %v315, %v315
        %v321 = vunpack.c.l.b16 %v248
        %v322 = vunpack.c.l.b16 %v249
        %v323 = vunpack.c.l.b16 %v250
        %v324 = vunpack.c.l.b16 %v251
        %v325 = vpack.c.b16 %v322, %v321
        %v326 = vpack.c.b16 %v324, %v323
        %v330 = vsel %vm271, %v316, 0
        %332 = vmatprep.subr.bf16.mxu0 0
        %333 = vmatpush1.bf16.msra.mxu0 %v325
        %334 = vmatprep.subr.bf16.mxu0 0
        %335 = vmatpush1.bf16.msra.mxu0 %v326
        %336 = vmatprep.subr.bf16.mxu0 0
        %337 = vmatpush1.bf16.msra.mxu0 0
        %338 = vmatprep.subr.bf16.mxu0 0
        %339 = vmatpush1.bf16.msra.mxu0 0
        %340 = vmatprep.subr.bf16.mxu0 0
        %341 = vmatpush1.bf16.msra.mxu0 0
        %342 = vmatprep.subr.bf16.mxu0 0
        %343 = vmatpush1.bf16.msra.mxu0 0
        %344 = vmatprep.subr.bf16.mxu0 0
        %345 = vmatpush1.bf16.msra.mxu0 0
        %346 = vmatprep.subr.bf16.mxu0 0
        %347 = vmatpush1.bf16.msra.mxu0 0
        %348 = vmatprep.subr.bf16.mxu0 0
        %349 = vmatpush1.bf16.msra.mxu0 0
        %350 = vmatprep.subr.bf16.mxu0 0
        %351 = vmatpush1.bf16.msra.mxu0 0
        %352 = vmatprep.subr.bf16.mxu0 0
        %353 = vmatpush1.bf16.msra.mxu0 0
        %354 = vmatprep.subr.bf16.mxu0 0
        %355 = vmatpush1.bf16.msra.mxu0 0
        %356 = vmatprep.subr.bf16.mxu0 0
        %357 = vmatpush1.bf16.msra.mxu0 0
        %358 = vmatprep.subr.bf16.mxu0 0
        %359 = vmatpush1.bf16.msra.mxu0 0
        %360 = vmatprep.subr.bf16.mxu0 0
        %361 = vmatpush1.bf16.msra.mxu0 0
        %362 = vmatprep.subr.bf16.mxu0 0
        %363 = vmatpush1.bf16.msra.mxu0 0
        %364 = vmatprep.mubr.bf16.mxu0 0
        %365 = vmatmul.mubr.bf16.gmra.mrb[0].mxu0 %v330
        %v366 = vpop.f32.mrb[0].mxu0
        %v367 = vadd.f32 0.0, %v366
        %v368 = vpop.f32.mrb[0].mxu0
        %v369 = vpop.f32.mrb[0].mxu0
        %v370 = vpop.f32.mrb[0].mxu0
        %371 = vdwg.mxu0
        %v372 = vadd.f32 %v243, %v367
        %v373 = vlaneseq
        %v374 = vshrl.u32 %v373, 7
        %v375 = vsub.s32 1, %v374
        %v376 = vrot.slane %v252, %v375
        %v377 = vadd.f32 %v372, %v376
        %378 = vst.msk [vmem:[%s241] sm:$0xff] %vm271, %v377
        %s379 = sand.u32 %s119, 1
        %s380 = scalar_lea.sflag [#allocation4], %s379
        %s381 = sand.u32 %s119, 1
        %s382 = smul.addr %s381, 8
        %s383 = scalar_lea.vmem [#allocation8], %s382
        // Predicated region
        $region49: #{angle_resnet_layers.1} parent=35 // pred_check
          %p384 = pneg %p129
        $region50: #{angle_resnet_layers.1} parent=35 // pred_check_branch
          %386 = sbr.rel (%p384) target = $region52
        $region51: #{angle_resnet_layers.1} parent=35 // pred_region
          %s388 = ssub.s32 128, 128
          %389 = vsyncadd %s380, %s388
          %s390 = smul.addr %s22, 128
          %s391 = scalar_lea.hbm %s4, %s390
          %s393 = sshll.u32 %s383, 4
          %s394 = int_to_ptr.vmem [resolvable:$true] %s393
          %396 = dma.vmem_to_hbm [thread:$0]  %s394, 128, %s391, %s380
        $region52: #{angle_resnet_layers.1} parent=35 // pred_fallthru
          _
      $region36: #{angle_resnet_layers.1} parent=5 // pred_fallthru
        _
      %p397 = scmp.le.s32.totalorder 2, %s17
      // Predicated region
      $region53: #{angle_resnet_layers.1} parent=5 // pred_check
        %p398 = pneg %p397
      $region54: #{angle_resnet_layers.1} parent=5 // pred_check_branch
        %400 = sbr.rel (%p398) target = $region56
      $region55: #{angle_resnet_layers.1} parent=5 // pred_region
        %s401 = ssub.s32 %s17, 2
        // Predicated region
        $region57: #{angle_resnet_layers.1} parent=55 // pred_check
          %p402 = pneg %p135
        $region58: #{angle_resnet_layers.1} parent=55 // pred_check_branch
          %404 = sbr.rel (%p402) target = $region60
        $region59: #{angle_resnet_layers.1} parent=55 // pred_region
          %s405 = sand.u32 %s120, 1
          %s406 = scalar_lea.sflag [#allocation4], %s405
          %s407 = sand.u32 %s120, 1
          %s408 = smul.addr %s407, 8
          %s409 = scalar_lea.vmem [#allocation8], %s408
          %410 = dma.done %s406, 128
        $region60: #{angle_resnet_layers.1} parent=55 // pred_fallthru
          _
      $region56: #{angle_resnet_layers.1} parent=5 // pred_fallthru
        _
    $region6: #{angle_resnet_layers.1} parent=1 // loop_footer
      %s21 = sadd.s32 1, %s17
    $region7: #{angle_resnet_layers.1} parent=1 // loop_footer_branch
      %16 = sbr.rel target = $region3
    $region8: #{angle_resnet_layers.1} parent=1 // loop_exit
      _
    %411 = vsyncpa [#allocation3], 1
    %s412 = scalar_lea.sflag [#allocation3], 1
    %413 = vsyncpa %s412, 1
    %414 = vsyncpa [#allocation6], 1
    %415 = vsyncpa [#allocation4], 1
    %s416 = scalar_lea.sflag [#allocation4], 1
    %417 = vsyncpa %s416, 1

</llo_original>
